<compile_context>
chip_gen: v6e
topology: v6e:2x2x1
jax: 0.10.0
libtpu: 0.0.40
codegen_flags: <defaults>
</compile_context>

<pallas_src>
import jax
import jax.numpy as jnp
from jax.experimental import pallas as pl
from jax.experimental.pallas import tpu as pltpu

IN_FEATURES = 2      # 2-D synthetic cluster data in the original script
NUM_HIDDEN = 32
NUM_OUTPUTS = 3      # three classes


def mlp_softmax_kernel(xt_ref, w1_ref, b1_ref, w2_ref, b2_ref, o_ref):
    xt = xt_ref[...]                       # [F, tm]  (batch on lanes)
    w1 = w1_ref[...]                       # [H, F]
    f_in = xt.shape[0]

    # ---- Layer 1: h = relu(W1 @ x^T + b1) as VPU FMAs (K = F = 2) ----------
    # Each term is an outer-product broadcast [H,1] * [1,tm] -> [H,tm]; this
    # stays on the VPU instead of pushing a K=2 contraction through the MXU.
    acc = w1[:, 0:1] * xt[0:1, :]
    for f in range(1, f_in):               # unrolled at trace time (F is static)
        acc = acc + w1[:, f:f + 1] * xt[f:f + 1, :]
    h = jnp.maximum(acc + b1_ref[...], 0.0)               # [H, tm]

    # ---- Layer 2: logits = W2 @ h + b2 (single MXU matmul, lane-dense N) ---
    logits = jnp.dot(w2_ref[...], h, preferred_element_type=jnp.float32)
    logits = logits + b2_ref[...]                          # [C, tm]

    # ---- Softmax over the class (sublane) axis, numerically stable ---------
    m = jnp.max(logits, axis=0, keepdims=True)             # [1, tm]
    e = jnp.exp(logits - m)                                # EUP
    denom = jnp.sum(e, axis=0, keepdims=True)              # [1, tm]
    # Exact normalization (approx reciprocal broke sum-to-one by ~2e-3).
    o_ref[...] = (e / denom).astype(o_ref.dtype)           # lane-dense store


def net_forward(x, w1, b1, w2, b2, *, tm=256):
    """Forward pass of `Net`.

    x : [N, F] float32 (rows = samples, like the PyTorch module)
    w1: [H, F], b1: [H], w2: [C, H], b2: [C]   (PyTorch nn.Linear layout)
    returns softmax probabilities [N, C].
    """
    N, F = x.shape
    H = w1.shape[0]
    C = w2.shape[0]

    # Transposed compute layout: batch on the 128-lane axis.
    xt = x.T                                               # [F, N]

    # Lane-align / tile-align the batch dimension.
    n_pad = pl.cdiv(N, 128) * 128
    tm_eff = max(128, (min(tm, n_pad) // 128) * 128)
    n_pad = pl.cdiv(n_pad, tm_eff) * tm_eff
    if n_pad != N:
        xt = jnp.pad(xt, ((0, 0), (0, n_pad - N)))

    b1_2d = b1.reshape(H, 1)
    b2_2d = b2.reshape(C, 1)

    grid = (n_pad // tm_eff,)
    probs_t = pl.pallas_call(
        mlp_softmax_kernel,
        out_shape=jax.ShapeDtypeStruct((C, n_pad), jnp.float32),
        grid_spec=pltpu.PrefetchScalarGridSpec(
            num_scalar_prefetch=0,
            grid=grid,
            in_specs=[
                pl.BlockSpec((F, tm_eff), lambda i: (0, i)),   # x^T row-tile
                pl.BlockSpec((H, F), lambda i: (0, 0)),        # W1 (resident)
                pl.BlockSpec((H, 1), lambda i: (0, 0)),        # b1
                pl.BlockSpec((C, H), lambda i: (0, 0)),        # W2
                pl.BlockSpec((C, 1), lambda i: (0, 0)),        # b2
            ],
            out_specs=pl.BlockSpec((C, tm_eff), lambda i: (0, i)),
        ),
        compiler_params=pltpu.CompilerParams(
            dimension_semantics=("parallel",)),
    )(xt, w1, b1_2d, w2, b2_2d)

    return probs_t[:, :N].T                                 # back to [N, C]


def reference_forward(x, w1, b1, w2, b2):
    h = jnp.maximum(x @ w1.T + b1, 0.0)
    logits = h @ w2.T + b2
    return jax.nn.softmax(logits, axis=-1)


if __name__ == "__main__":
    key = jax.random.PRNGKey(0)
    kx, k1, k2, k3, k4 = jax.random.split(key, 5)

    # Synthetic three-cluster 2-D data (small stand-in for the 1500-pt set).
    N = 512
    base = jax.random.normal(kx, (N, IN_FEATURES), dtype=jnp.float32)
    cls = jnp.arange(N) % 3
    offsets = jnp.where(cls == 0, 4.0,
                        jnp.where(cls == 1, -4.0, -8.0)).astype(jnp.float32)
    x = base + offsets[:, None]

    # Deterministic parameter init, PyTorch nn.Linear layout [out, in].
    bound1 = 1.0 / jnp.sqrt(IN_FEATURES)
    bound2 = 1.0 / jnp.sqrt(NUM_HIDDEN)
    w1 = jax.random.uniform(k1, (NUM_HIDDEN, IN_FEATURES), jnp.float32,
                            -bound1, bound1)
    b1 = jax.random.uniform(k2, (NUM_HIDDEN,), jnp.float32, -bound1, bound1)
    w2 = jax.random.uniform(k3, (NUM_OUTPUTS, NUM_HIDDEN), jnp.float32,
                            -bound2, bound2)
    b2 = jax.random.uniform(k4, (NUM_OUTPUTS,), jnp.float32, -bound2, bound2)

    out = net_forward(x, w1, b1, w2, b2, tm=256)
    out = jax.block_until_ready(out)

    ref = reference_forward(x, w1, b1, w2, b2)
    assert out.shape == (N, NUM_OUTPUTS)
    assert jnp.allclose(out, ref, atol=1e-5, rtol=1e-5), "mismatch vs reference"
    assert jnp.allclose(jnp.sum(out, axis=-1), 1.0, atol=1e-5)

    print("KERNEL_OK")
</pallas_src>

<mosaic_0001>
module attributes {stable_mosaic.version = 11 : i64} {
  func.func @mlp_softmax_kernel(%arg0: i32, %arg1: memref<2x256xf32, #tpu.memory_space<vmem>>, %arg2: memref<32x2xf32, #tpu.memory_space<vmem>>, %arg3: memref<32x1xf32, #tpu.memory_space<vmem>>, %arg4: memref<3x32xf32, #tpu.memory_space<vmem>>, %arg5: memref<3x1xf32, #tpu.memory_space<vmem>>, %arg6: memref<3x256xf32, #tpu.memory_space<vmem>>) attributes {dimension_semantics = [#tpu.dimension_semantics<parallel>], iteration_bounds = array<i64: 2>, scalar_prefetch = 0 : i64, scratch_operands = 0 : i64, tpu.core_type = #tpu.core_type<tc>, window_params = [{transform_indices = @transform_0, window_bounds = array<i64: 2, 256>}, {pipeline_mode = #tpu.pipeline_mode<synchronous>, transform_indices = @transform_1, window_bounds = array<i64: 32, 2>}, {pipeline_mode = #tpu.pipeline_mode<synchronous>, transform_indices = @transform_2, window_bounds = array<i64: 32, 1>}, {pipeline_mode = #tpu.pipeline_mode<synchronous>, transform_indices = @transform_3, window_bounds = array<i64: 3, 32>}, {pipeline_mode = #tpu.pipeline_mode<synchronous>, transform_indices = @transform_4, window_bounds = array<i64: 3, 1>}, {transform_indices = @transform_5, window_bounds = array<i64: 3, 256>}]} {
    %c0 = arith.constant 0 : index
    %c0_0 = arith.constant 0 : index
    %0 = vector.load %arg1[%c0, %c0_0] : memref<2x256xf32, #tpu.memory_space<vmem>>, vector<2x256xf32>
    %c0_1 = arith.constant 0 : index
    %c0_2 = arith.constant 0 : index
    %1 = vector.load %arg2[%c0_1, %c0_2] : memref<32x2xf32, #tpu.memory_space<vmem>>, vector<32x2xf32>
    %2 = vector.extract_strided_slice %1 {offsets = [0, 0], sizes = [32, 1], strides = [1, 1]} : vector<32x2xf32> to vector<32x1xf32>
    %3 = vector.extract_strided_slice %0 {offsets = [0, 0], sizes = [1, 256], strides = [1, 1]} : vector<2x256xf32> to vector<1x256xf32>
    %4 = vector.broadcast %2 : vector<32x1xf32> to vector<32x256xf32>
    %5 = vector.broadcast %3 : vector<1x256xf32> to vector<32x256xf32>
    %6 = arith.mulf %4, %5 : vector<32x256xf32>
    %7 = vector.extract_strided_slice %1 {offsets = [0, 1], sizes = [32, 1], strides = [1, 1]} : vector<32x2xf32> to vector<32x1xf32>
    %8 = vector.extract_strided_slice %0 {offsets = [1, 0], sizes = [1, 256], strides = [1, 1]} : vector<2x256xf32> to vector<1x256xf32>
    %9 = vector.broadcast %7 : vector<32x1xf32> to vector<32x256xf32>
    %10 = vector.broadcast %8 : vector<1x256xf32> to vector<32x256xf32>
    %11 = arith.mulf %9, %10 : vector<32x256xf32>
    %12 = arith.addf %6, %11 : vector<32x256xf32>
    %c0_3 = arith.constant 0 : index
    %c0_4 = arith.constant 0 : index
    %13 = vector.load %arg3[%c0_3, %c0_4] : memref<32x1xf32, #tpu.memory_space<vmem>>, vector<32x1xf32>
    %14 = vector.broadcast %13 : vector<32x1xf32> to vector<32x256xf32>
    %15 = arith.addf %12, %14 : vector<32x256xf32>
    %cst = arith.constant 0.000000e+00 : f32
    %16 = vector.broadcast %cst : f32 to vector<32x256xf32>
    %17 = arith.maximumf %15, %16 : vector<32x256xf32>
    %c0_5 = arith.constant 0 : index
    %c0_6 = arith.constant 0 : index
    %18 = vector.load %arg4[%c0_5, %c0_6] : memref<3x32xf32, #tpu.memory_space<vmem>>, vector<3x32xf32>
    %cst_7 = arith.constant dense<0.000000e+00> : vector<3x256xf32>
    %19 = tpu.matmul %18, %17, %cst_7 {dimension_numbers = #tpu.dot_dimension_numbers<[1], [0], [0], [1], [0, 0, 1, 1], [], []>} : vector<3x32xf32>, vector<32x256xf32>, vector<3x256xf32> -> vector<3x256xf32>
    %c0_8 = arith.constant 0 : index
    %c0_9 = arith.constant 0 : index
    %20 = vector.load %arg5[%c0_8, %c0_9] : memref<3x1xf32, #tpu.memory_space<vmem>>, vector<3x1xf32>
    %21 = vector.broadcast %20 : vector<3x1xf32> to vector<3x256xf32>
    %22 = arith.addf %19, %21 : vector<3x256xf32>
    %cst_10 = arith.constant dense<0xFF800000> : vector<256xf32>
    %23 = vector.multi_reduction <maximumf>, %22, %cst_10 [0] : vector<3x256xf32> to vector<256xf32>
    %24 = vector.shape_cast %23 : vector<256xf32> to vector<1x256xf32>
    %25 = vector.broadcast %24 : vector<1x256xf32> to vector<3x256xf32>
    %26 = arith.subf %22, %25 : vector<3x256xf32>
    %27 = math.exp %26 : vector<3x256xf32>
    %cst_11 = arith.constant dense<0.000000e+00> : vector<256xf32>
    %28 = vector.multi_reduction <add>, %27, %cst_11 [0] : vector<3x256xf32> to vector<256xf32>
    %29 = vector.shape_cast %28 : vector<256xf32> to vector<1x256xf32>
    %30 = vector.broadcast %29 : vector<1x256xf32> to vector<3x256xf32>
    %31 = arith.divf %27, %30 : vector<3x256xf32>
    %c0_12 = arith.constant 0 : index
    %c0_13 = arith.constant 0 : index
    %32 = vector.load %arg6[%c0_12, %c0_13] : memref<3x256xf32, #tpu.memory_space<vmem>>, vector<3x256xf32>
    tpu.vector_store %arg6[%c0_12, %c0_13], %31 {strides = array<i32>} : memref<3x256xf32, #tpu.memory_space<vmem>>, vector<3x256xf32>,
    return
  }
  func.func @transform_0(%arg0: i32) -> (i32, i32) {
    %c0_i32 = arith.constant 0 : i32
    %c0_i32_0 = arith.constant 0 : i32
    return %c0_i32, %arg0 : i32, i32
  }
  func.func @transform_1(%arg0: i32) -> (i32, i32) {
    %c0_i32 = arith.constant 0 : i32
    %c0_i32_0 = arith.constant 0 : i32
    %c0_i32_1 = arith.constant 0 : i32
    return %c0_i32, %c0_i32_0 : i32, i32
  }
  func.func @transform_2(%arg0: i32) -> (i32, i32) {
    %c0_i32 = arith.constant 0 : i32
    %c0_i32_0 = arith.constant 0 : i32
    %c0_i32_1 = arith.constant 0 : i32
    return %c0_i32, %c0_i32_0 : i32, i32
  }
  func.func @transform_3(%arg0: i32) -> (i32, i32) {
    %c0_i32 = arith.constant 0 : i32
    %c0_i32_0 = arith.constant 0 : i32
    %c0_i32_1 = arith.constant 0 : i32
    return %c0_i32, %c0_i32_0 : i32, i32
  }
  func.func @transform_4(%arg0: i32) -> (i32, i32) {
    %c0_i32 = arith.constant 0 : i32
    %c0_i32_0 = arith.constant 0 : i32
    %c0_i32_1 = arith.constant 0 : i32
    return %c0_i32, %c0_i32_0 : i32, i32
  }
  func.func @transform_5(%arg0: i32) -> (i32, i32) {
    %c0_i32 = arith.constant 0 : i32
    %c0_i32_0 = arith.constant 0 : i32
    return %c0_i32, %arg0 : i32, i32
  }
}

</mosaic_0001>

<llo_original>
// kernel: tpu_custom_call.1
$region0: #{tpu_custom_call.1}
  #allocation0 [shape = 'u32[]', space=smem, size = 0x4, offset = 0x4, fixed_abs, tag = 'smem constant byte address 0x4 - core index']
  #allocation1 [shape = 'u32[144,128]{1,0:T(1,128)}', space=vmem, size = 0x12000, scoped, tag = 'internal scratch']
  %s0 = inlined_call_operand.vmem [shape: f32[2,512], index: 0, kind: input, shape index: {}]
  %s1 = inlined_call_operand.vmem [shape: f32[32,2], index: 1, kind: input, shape index: {}]
  %s2 = inlined_call_operand.vmem [shape: f32[32,1], index: 2, kind: input, shape index: {}]
  %s3 = inlined_call_operand.vmem [shape: f32[3,32], index: 3, kind: input, shape index: {}]
  %s4 = inlined_call_operand.vmem [shape: f32[3,1], index: 4, kind: input, shape index: {}]
  %s5 = inlined_call_operand.hbm [shape: f32[3,512], index: 5, kind: output, shape index: {}]
  %s6 = sld [smem:[#allocation0]]
  $region53: #{tpu_custom_call.1} parent=0
    _
  %s8 = ssub.s32 1, %s6
  %s9 = scalar_select 0, %s8, %s6
  $region1: #{tpu_custom_call.1} parent=0
    #allocation2 [shape = 'u8[8192]{0}', space=vmem, size = 0x2000, scoped, tag = 'output window, operand 0']
    #allocation3 [shape = 's32[2]{0}', space=sflag, size = 0x8, scoped, tag = 'scoped memory for tpu_custom_call.1']
    %10 = vsyncpa [#allocation3], 0
    %s11 = scalar_lea.sflag [#allocation3], 1
    %12 = vsyncpa %s11, 0
    loop: start=0, step=1, limit=4
    $region2: #{tpu_custom_call.1} parent=1 // loop_pre_header
      _
    $region3: #{tpu_custom_call.1} parent=1 // loop_header
      %s14 = sphi 0, %s18
      %p15 = scmp.ge.s32.totalorder %s14, 4
      %s24 = sphi 0, %s26
      %s27 = sphi 0, %s24
      %s28 = sphi 0, %s27
      %s44 = sphi 0, %s28
      %s48 = sphi 0, %s48
      %s50 = sphi 0, %s48
      %s51 = sphi 0, %s50
      %s65 = sphi 0, %s51
      %s69 = sphi 0, %s69
      %s71 = sphi 0, %s69
      %s72 = sphi 0, %s71
      %s86 = sphi 0, %s72
      %s90 = sphi 0, %s90
      %s92 = sphi 0, %s90
      %s93 = sphi 0, %s92
      %s107 = sphi 0, %s93
      %s111 = sphi 0, %s111
      %s113 = sphi 0, %s111
      %s114 = sphi 0, %s113
      %s128 = sphi 0, %s114
      %s134 = sphi 0, %s136
      %s137 = sphi 0, %s134
      %s138 = sphi 0, %s137
      %s154 = sphi 0, %s138
    $region4: #{tpu_custom_call.1} parent=1 // loop_header_branch
      %17 = sbr.rel (%p15) target = $region8
    $region5: #{tpu_custom_call.1} parent=1 // loop_body
      %s19 = ssub.s32 %s14, 1
      %s20 = ssub.s32 %s14, 2
      %s21 = sadd.s32 %s14, 1
      %s22 = ssub.s32 %s14, %s21
      %p23 = scmp.eq.s32.totalorder %s22, 0
      %s25 = sadd.s32 %s24, 1
      %s26 = scalar_select %p23, %s24, %s25
      %p29 = pneg %p23
      %p30 = scmp.eq.s32.totalorder %s14, 1
      %p31 = por %p29, %p30
      %p32 = scmp.ne.s32.totalorder %s24, %s27
      %p33 = scmp.eq.s32.totalorder %s14, 0
      %p34 = por %p32, %p33
      %p35 = scmp.ne.s32.totalorder %s24, %s27
      %p36 = scmp.eq.s32.totalorder %s19, 1
      %p37 = por %p35, %p36
      %p38 = scmp.ne.s32.totalorder %s27, %s28
      %p39 = scmp.eq.s32.totalorder %s19, 0
      %p40 = por %p38, %p39
      %p41 = scmp.ne.s32.totalorder %s27, %s28
      %p42 = scmp.eq.s32.totalorder %s20, 1
      %p43 = por %p41, %p42
      %p45 = scmp.ne.s32.totalorder %s28, %s44
      %p46 = scmp.eq.s32.totalorder %s20, 0
      %p47 = por %p45, %p46
      %s49 = sadd.s32 %s48, 1
      %p52 = scmp.eq.s32.totalorder %s14, 1
      %p53 = scmp.ne.s32.totalorder %s48, %s50
      %p54 = scmp.eq.s32.totalorder %s14, 0
      %p55 = por %p53, %p54
      %p56 = scmp.ne.s32.totalorder %s48, %s50
      %p57 = scmp.eq.s32.totalorder %s19, 1
      %p58 = por %p56, %p57
      %p59 = scmp.ne.s32.totalorder %s50, %s51
      %p60 = scmp.eq.s32.totalorder %s19, 0
      %p61 = por %p59, %p60
      %p62 = scmp.ne.s32.totalorder %s50, %s51
      %p63 = scmp.eq.s32.totalorder %s20, 1
      %p64 = por %p62, %p63
      %p66 = scmp.ne.s32.totalorder %s51, %s65
      %p67 = scmp.eq.s32.totalorder %s20, 0
      %p68 = por %p66, %p67
      %s70 = sadd.s32 %s69, 1
      %p73 = scmp.eq.s32.totalorder %s14, 1
      %p74 = scmp.ne.s32.totalorder %s69, %s71
      %p75 = scmp.eq.s32.totalorder %s14, 0
      %p76 = por %p74, %p75
      %p77 = scmp.ne.s32.totalorder %s69, %s71
      %p78 = scmp.eq.s32.totalorder %s19, 1
      %p79 = por %p77, %p78
      %p80 = scmp.ne.s32.totalorder %s71, %s72
      %p81 = scmp.eq.s32.totalorder %s19, 0
      %p82 = por %p80, %p81
      %p83 = scmp.ne.s32.totalorder %s71, %s72
      %p84 = scmp.eq.s32.totalorder %s20, 1
      %p85 = por %p83, %p84
      %p87 = scmp.ne.s32.totalorder %s72, %s86
      %p88 = scmp.eq.s32.totalorder %s20, 0
      %p89 = por %p87, %p88
      %s91 = sadd.s32 %s90, 1
      %p94 = scmp.eq.s32.totalorder %s14, 1
      %p95 = scmp.ne.s32.totalorder %s90, %s92
      %p96 = scmp.eq.s32.totalorder %s14, 0
      %p97 = por %p95, %p96
      %p98 = scmp.ne.s32.totalorder %s90, %s92
      %p99 = scmp.eq.s32.totalorder %s19, 1
      %p100 = por %p98, %p99
      %p101 = scmp.ne.s32.totalorder %s92, %s93
      %p102 = scmp.eq.s32.totalorder %s19, 0
      %p103 = por %p101, %p102
      %p104 = scmp.ne.s32.totalorder %s92, %s93
      %p105 = scmp.eq.s32.totalorder %s20, 1
      %p106 = por %p104, %p105
      %p108 = scmp.ne.s32.totalorder %s93, %s107
      %p109 = scmp.eq.s32.totalorder %s20, 0
      %p110 = por %p108, %p109
      %s112 = sadd.s32 %s111, 1
      %p115 = scmp.eq.s32.totalorder %s14, 1
      %p116 = scmp.ne.s32.totalorder %s111, %s113
      %p117 = scmp.eq.s32.totalorder %s14, 0
      %p118 = por %p116, %p117
      %p119 = scmp.ne.s32.totalorder %s111, %s113
      %p120 = scmp.eq.s32.totalorder %s19, 1
      %p121 = por %p119, %p120
      %p122 = scmp.ne.s32.totalorder %s113, %s114
      %p123 = scmp.eq.s32.totalorder %s19, 0
      %p124 = por %p122, %p123
      %p125 = scmp.ne.s32.totalorder %s113, %s114
      %p126 = scmp.eq.s32.totalorder %s20, 1
      %p127 = por %p125, %p126
      %p129 = scmp.ne.s32.totalorder %s114, %s128
      %p130 = scmp.eq.s32.totalorder %s20, 0
      %p131 = por %p129, %p130
      %s132 = ssub.s32 %s14, %s21
      %p133 = scmp.eq.s32.totalorder %s132, 0
      %s135 = sadd.s32 %s134, 1
      %s136 = scalar_select %p133, %s134, %s135
      %p139 = pneg %p133
      %p140 = scmp.eq.s32.totalorder %s14, 1
      %p141 = por %p139, %p140
      %p142 = scmp.ne.s32.totalorder %s134, %s137
      %p143 = scmp.eq.s32.totalorder %s14, 0
      %p144 = por %p142, %p143
      %p145 = scmp.ne.s32.totalorder %s134, %s137
      %p146 = scmp.eq.s32.totalorder %s19, 1
      %p147 = por %p145, %p146
      %p148 = scmp.ne.s32.totalorder %s137, %s138
      %p149 = scmp.eq.s32.totalorder %s19, 0
      %p150 = por %p148, %p149
      %p151 = scmp.ne.s32.totalorder %s137, %s138
      %p152 = scmp.eq.s32.totalorder %s20, 1
      %p153 = por %p151, %p152
      %p155 = scmp.ne.s32.totalorder %s138, %s154
      %p156 = scmp.eq.s32.totalorder %s20, 0
      %p157 = por %p155, %p156
      %p158 = scmp.le.s32.totalorder 1, %s14
      %p159 = scmp.lt.s32.totalorder %s14, 3
      %p160 = pnand %p158, %p159
      %p161 = pneg %p160
      // Predicated region
      $region9: #{tpu_custom_call.1} parent=5 // pred_check
        _
      $region10: #{tpu_custom_call.1} parent=5 // pred_check_branch
        %163 = sbr.rel (%p160) target = $region12
      $region11: #{tpu_custom_call.1} parent=5 // pred_region
        %s164 = ssub.s32 %s14, 1
        // Predicated region
        $region13: #{tpu_custom_call.1} parent=11 // pred_check
          %p165 = pneg %p61
        $region14: #{tpu_custom_call.1} parent=11 // pred_check_branch
          %167 = sbr.rel (%p165) target = $region16
        $region15: #{tpu_custom_call.1} parent=11 // pred_region
          _
        $region16: #{tpu_custom_call.1} parent=11 // pred_fallthru
          _
        // Predicated region
        $region17: #{tpu_custom_call.1} parent=11 // pred_check
          %p168 = pneg %p82
        $region18: #{tpu_custom_call.1} parent=11 // pred_check_branch
          %170 = sbr.rel (%p168) target = $region20
        $region19: #{tpu_custom_call.1} parent=11 // pred_region
          _
        $region20: #{tpu_custom_call.1} parent=11 // pred_fallthru
          _
        // Predicated region
        $region21: #{tpu_custom_call.1} parent=11 // pred_check
          %p171 = pneg %p103
        $region22: #{tpu_custom_call.1} parent=11 // pred_check_branch
          %173 = sbr.rel (%p171) target = $region24
        $region23: #{tpu_custom_call.1} parent=11 // pred_region
          _
        $region24: #{tpu_custom_call.1} parent=11 // pred_fallthru
          _
        // Predicated region
        $region25: #{tpu_custom_call.1} parent=11 // pred_check
          %p174 = pneg %p124
        $region26: #{tpu_custom_call.1} parent=11 // pred_check_branch
          %176 = sbr.rel (%p174) target = $region28
        $region27: #{tpu_custom_call.1} parent=11 // pred_region
          _
        $region28: #{tpu_custom_call.1} parent=11 // pred_fallthru
          _
      $region12: #{tpu_custom_call.1} parent=5 // pred_fallthru
        _
      %p177 = scmp.lt.s32.totalorder %s14, 2
      // Predicated region
      $region29: #{tpu_custom_call.1} parent=5 // pred_check
        %p178 = pneg %p177
      $region30: #{tpu_custom_call.1} parent=5 // pred_check_branch
        %180 = sbr.rel (%p178) target = $region32
      $region31: #{tpu_custom_call.1} parent=5 // pred_region
        // Predicated region
        $region33: #{tpu_custom_call.1} parent=31 // pred_check
          %p181 = pneg %p34
        $region34: #{tpu_custom_call.1} parent=31 // pred_check_branch
          %183 = sbr.rel (%p181) target = $region36
        $region35: #{tpu_custom_call.1} parent=31 // pred_region
          %s184 = smul.u32 2, %s14
          %p185 = scmp.lt.s32.totalorder %s184, 3
          %s186 = scalar_select %p185, %s184, 3
          %s187 = smul.addr %s186, 2
          %s188 = scalar_lea.vmem %s0, %s187
          %s189 = smul.u32 2, %s14
        $region36: #{tpu_custom_call.1} parent=31 // pred_fallthru
          _
      $region32: #{tpu_custom_call.1} parent=5 // pred_fallthru
        _
      %p190 = scmp.le.s32.totalorder 1, %s14
      %p191 = scmp.lt.s32.totalorder %s14, 3
      %p192 = pnand %p190, %p191
      %p193 = pneg %p192
      // Predicated region
      $region37: #{tpu_custom_call.1} parent=5 // pred_check
        _
      $region38: #{tpu_custom_call.1} parent=5 // pred_check_branch
        %195 = sbr.rel (%p192) target = $region40
      $region39: #{tpu_custom_call.1} parent=5 // pred_region
        %s196 = ssub.s32 %s14, 1
        %s197 = smul.u32 2, %s19
        %p198 = scmp.lt.s32.totalorder %s197, 3
        %s199 = scalar_select %p198, %s197, 3
        %s200 = smul.addr %s199, 2
        %s201 = scalar_lea.vmem %s0, %s200
        %p202 = pneg %p40
        %p203 = pneg %p37
        %p204 = pneg %p61
        %p205 = pneg %p58
        %p206 = pneg %p82
        %p207 = pneg %p79
        %p208 = pneg %p103
        %p209 = pneg %p100
        %p210 = pneg %p124
        %p211 = pneg %p121
        %p212 = pneg %p150
        %p213 = pneg %p147
        %s214 = sand.u32 %s137, 1
        %s215 = scalar_lea.sflag [#allocation3], %s214
        %s216 = sand.u32 %s137, 1
        %s217 = smul.addr %s216, 8
        %s218 = scalar_lea.vmem [#allocation2], %s217
        %s219 = smul.u32 2, %s19
        %p220 = scmp.lt.s32.totalorder %s219, 3
        %s221 = scalar_select %p220, %s219, 3
        %s222 = smul.addr %s221, 2
        %s223 = scalar_lea.vmem %s0, %s222
        %s224 = smul.u32 2, %s19
        %s225 = smul.u32 2, %s19
        %v226 = vld [vmem:[%s223] sm:$0xf]
        %v227 = vld [vmem:[%s1] sm:$0xff]
        %v228 = vld [vmem:[%s1 + $0x8] sm:$0xff]
        %v229 = vld [vmem:[%s1 + $0x10] sm:$0xff]
        %v230 = vld [vmem:[%s1 + $0x18] sm:$0xff]
        %232 = vset.pattern.permute.xlu0 0
        %233 = vperm.xlu0 %232, %v227
        %v234 = vpop.permute.xlu0 %233
        %237 = vset.pattern.permute.xlu0 0
        %238 = vperm.xlu0 %237, %v228
        %v239 = vpop.permute.xlu0 %238
        %242 = vset.pattern.permute.xlu0 0
        %243 = vperm.xlu0 %242, %v229
        %v244 = vpop.permute.xlu0 %243
        %247 = vset.pattern.permute.xlu0 0
        %248 = vperm.xlu0 %247, %v230
        %v249 = vpop.permute.xlu0 %248
        %v252 = vlaneseq
        %v253 = vshrl.u32 %v252, 7
        %v254 = vsub.s32 0, %v253
        %v255 = vrot.slane %v226, %v254
        %v256 = vlaneseq
        %v257 = vshrl.u32 %v256, 7
        %v258 = vsub.s32 2, %v257
        %v259 = vrot.slane %v226, %v258
        %v262 = vlaneseq
        %v263 = vshrl.u32 %v262, 7
        %v264 = vsub.s32 0, %v263
        %v265 = vrot.slane %v255, %v264
        %v266 = vlaneseq
        %v267 = vshrl.u32 %v266, 7
        %v268 = vsub.s32 0, %v267
        %v269 = vrot.slane %v259, %v268
        %v270 = vmul.f32 %v234, %v265
        %v271 = vmul.f32 %v234, %v269
        %v272 = vmul.f32 %v239, %v265
        %v273 = vmul.f32 %v239, %v269
        %v274 = vmul.f32 %v244, %v265
        %v275 = vmul.f32 %v244, %v269
        %v276 = vmul.f32 %v249, %v265
        %v277 = vmul.f32 %v249, %v269
        %278 = vset.pattern.permute.xlu0 1
        %279 = vperm.xlu0 %278, %v227
        %v280 = vpop.permute.xlu0 %279
        %282 = vset.pattern.permute.xlu0 1
        %283 = vperm.xlu0 %282, %v228
        %v284 = vpop.permute.xlu0 %283
        %286 = vset.pattern.permute.xlu0 1
        %287 = vperm.xlu0 %286, %v229
        %v288 = vpop.permute.xlu0 %287
        %290 = vset.pattern.permute.xlu0 1
        %291 = vperm.xlu0 %290, %v230
        %v292 = vpop.permute.xlu0 %291
        %v294 = vlaneseq
        %v295 = vshrl.u32 %v294, 7
        %v296 = vsub.s32 1, %v295
        %v297 = vrot.slane %v226, %v296
        %v298 = vlaneseq
        %v299 = vshrl.u32 %v298, 7
        %v300 = vsub.s32 3, %v299
        %v301 = vrot.slane %v226, %v300
        %v304 = vlaneseq
        %v305 = vshrl.u32 %v304, 7
        %v306 = vsub.s32 1, %v305
        %v307 = vrot.slane %v297, %v306
        %v308 = vlaneseq
        %v309 = vshrl.u32 %v308, 7
        %v310 = vsub.s32 1, %v309
        %v311 = vrot.slane %v301, %v310
        %v312 = vmul.f32 %v280, %v307
        %v313 = vmul.f32 %v280, %v311
        %v314 = vmul.f32 %v284, %v307
        %v315 = vmul.f32 %v284, %v311
        %v316 = vmul.f32 %v288, %v307
        %v317 = vmul.f32 %v288, %v311
        %v318 = vmul.f32 %v292, %v307
        %v319 = vmul.f32 %v292, %v311
        %v320 = vadd.f32 %v270, %v312
        %v321 = vadd.f32 %v271, %v313
        %v322 = vadd.f32 %v272, %v314
        %v323 = vadd.f32 %v273, %v315
        %v324 = vadd.f32 %v274, %v316
        %v325 = vadd.f32 %v275, %v317
        %v326 = vadd.f32 %v276, %v318
        %v327 = vadd.f32 %v277, %v319
        %v328 = vld [vmem:[%s2] sm:$0xff]
        %v329 = vld [vmem:[%s2 + $0x8] sm:$0xff]
        %v330 = vld [vmem:[%s2 + $0x10] sm:$0xff]
        %v331 = vld [vmem:[%s2 + $0x18] sm:$0xff]
        %333 = vset.pattern.permute.xlu0 0
        %334 = vperm.xlu0 %333, %v328
        %v335 = vpop.permute.xlu0 %334
        %338 = vset.pattern.permute.xlu0 0
        %339 = vperm.xlu0 %338, %v329
        %v340 = vpop.permute.xlu0 %339
        %343 = vset.pattern.permute.xlu0 0
        %344 = vperm.xlu0 %343, %v330
        %v345 = vpop.permute.xlu0 %344
        %348 = vset.pattern.permute.xlu0 0
        %349 = vperm.xlu0 %348, %v331
        %v350 = vpop.permute.xlu0 %349
        %v352 = vadd.f32 %v320, %v335
        %v353 = vadd.f32 %v321, %v335
        %v354 = vadd.f32 %v322, %v340
        %v355 = vadd.f32 %v323, %v340
        %v356 = vadd.f32 %v324, %v345
        %v357 = vadd.f32 %v325, %v345
        %v358 = vadd.f32 %v326, %v350
        %v359 = vadd.f32 %v327, %v350
        %v360 = vmax.f32 %v352, 0.0
        %v361 = vmax.f32 %v353, 0.0
        %v362 = vmax.f32 %v354, 0.0
        %v363 = vmax.f32 %v355, 0.0
        %v364 = vmax.f32 %v356, 0.0
        %v365 = vmax.f32 %v357, 0.0
        %v366 = vmax.f32 %v358, 0.0
        %v367 = vmax.f32 %v359, 0.0
        %v368 = vld [vmem:[%s3] sm:$0x7]
        %v369 = vld [vmem:[%s4] sm:$0x7]
        %371 = vset.pattern.permute.xlu0 0
        %372 = vperm.xlu0 %371, %v369
        %v373 = vpop.permute.xlu0 %372
        %vm375 = vcmask 261120
        %v377 = vsel %vm375, %v368, 0
        %379 = vmatprep.subr.mxu0 0.0
        %380 = vmatpush1.msra.mxu0 0.0
        %381 = vmatprep.subr.mxu0 0.0
        %382 = vmatpush1.msra.mxu0 0.0
        %383 = vmatprep.subr.mxu0 0.0
        %384 = vmatpush1.msra.mxu0 0.0
        %385 = vmatprep.subr.mxu0 0.0
        %386 = vmatpush1.msra.mxu0 0.0
        %387 = vmatprep.subr.mxu0 0.0
        %388 = vmatpush1.msra.mxu0 0.0
        %389 = vmatprep.subr.mxu0 0.0
        %390 = vmatpush1.msra.mxu0 0.0
        %391 = vmatprep.subr.mxu0 0.0
        %392 = vmatpush1.msra.mxu0 0.0
        %393 = vmatprep.subr.mxu0 0.0
        %394 = vmatpush1.msra.mxu0 0.0
        %395 = vmatprep.subr.mxu0 0.0
        %396 = vmatpush1.msra.mxu0 0.0
        %397 = vmatprep.subr.mxu0 0.0
        %398 = vmatpush1.msra.mxu0 0.0
        %399 = vmatprep.subr.mxu0 0.0
        %400 = vmatpush1.msra.mxu0 0.0
        %401 = vmatprep.subr.mxu0 0.0
        %402 = vmatpush1.msra.mxu0 0.0
        %403 = vmatprep.subr.mxu0 %v367
        %404 = vmatpush1.msra.mxu0 %v366
        %405 = vmatprep.subr.mxu0 %v365
        %406 = vmatpush1.msra.mxu0 %v364
        %407 = vmatprep.subr.mxu0 %v363
        %408 = vmatpush1.msra.mxu0 %v362
        %409 = vmatprep.subr.mxu0 %v361
        %410 = vmatpush1.msra.mxu0 %v360
        %411 = vmatprep.subr.mxu0 0.0
        %412 = vmatpush2.msra.mxu0 0.0
        %413 = vmatprep.subr.mxu0 0.0
        %414 = vmatpush2.msra.mxu0 0.0
        %415 = vmatprep.subr.mxu0 0.0
        %416 = vmatpush2.msra.mxu0 0.0
        %417 = vmatprep.subr.mxu0 0.0
        %418 = vmatpush2.msra.mxu0 0.0
        %419 = vmatprep.subr.mxu0 0.0
        %420 = vmatpush2.msra.mxu0 0.0
        %421 = vmatprep.subr.mxu0 0.0
        %422 = vmatpush2.msra.mxu0 0.0
        %423 = vmatprep.subr.mxu0 0.0
        %424 = vmatpush2.msra.mxu0 0.0
        %425 = vmatprep.subr.mxu0 0.0
        %426 = vmatpush2.msra.mxu0 0.0
        %427 = vmatprep.subr.mxu0 0.0
        %428 = vmatpush2.msra.mxu0 0.0
        %429 = vmatprep.subr.mxu0 0.0
        %430 = vmatpush2.msra.mxu0 0.0
        %431 = vmatprep.subr.mxu0 0.0
        %432 = vmatpush2.msra.mxu0 0.0
        %433 = vmatprep.subr.mxu0 0.0
        %434 = vmatpush2.msra.mxu0 0.0
        %435 = vmatprep.subr.mxu0 0.0
        %436 = vmatpush2.msra.mxu0 0.0
        %437 = vmatprep.subr.mxu0 0.0
        %438 = vmatpush2.msra.mxu0 0.0
        %439 = vmatprep.subr.mxu0 0.0
        %440 = vmatpush2.msra.mxu0 0.0
        %441 = vmatprep.subr.mxu0 0.0
        %442 = vmatpush2.msra.mxu0 0.0
        %443 = vmatprep.mubr.f32.mxu0 0.0
        %444 = vmatmul.mubr.f32.gmra.mxu0 %v377
        %v445 = vpop.f32.mrf.mxu0
        %v446 = vadd.f32 %v373, %v445
        %v447 = vpop.f32.mrf.mxu0
        %v448 = vadd.f32 %v373, %v447
        %449 = vdwg.mxu0
        %vm450 = vcmask 1042432
        %v451 = vsel %vm450, %v446, -inf
        %v452 = vrot.slane %v451, 4
        %v453 = vmax.f32 %v451, %v452
        %v454 = vrot.slane %v453, 2
        %v455 = vmax.f32 %v453, %v454
        %v456 = vrot.slane %v455, 1
        %v457 = vmax.f32 %v455, %v456
        %v458 = vsel %vm450, %v448, -inf
        %v459 = vrot.slane %v458, 4
        %v460 = vmax.f32 %v458, %v459
        %v461 = vrot.slane %v460, 2
        %v462 = vmax.f32 %v460, %v461
        %v463 = vrot.slane %v462, 1
        %v464 = vmax.f32 %v462, %v463
        %v465 = vsub.f32 %v446, %v457
        %v466 = vsub.f32 %v448, %v464
        %v467 = vmul.f32 %v465, 1.442695
        %v468 = vpow.pop %v467
        %v469 = vmul.f32 %v466, 1.442695
        %v470 = vpow.pop %v469
        %v471 = vsel %vm450, %v468, 0.0
        %v472 = vrot.slane %v471, 4
        %v473 = vadd.f32 %v471, %v472
        %v474 = vrot.slane %v473, 2
        %v475 = vadd.f32 %v473, %v474
        %v476 = vrot.slane %v475, 1
        %v477 = vadd.f32 %v475, %v476
        %v478 = vsel %vm450, %v470, 0.0
        %v479 = vrot.slane %v478, 4
        %v480 = vadd.f32 %v478, %v479
        %v481 = vrot.slane %v480, 2
        %v482 = vadd.f32 %v480, %v481
        %v483 = vrot.slane %v482, 1
        %v484 = vadd.f32 %v482, %v483
        %v485 = vrcp.pop %v477
        %v486 = vmul.f32 %v468, %v485
        %v487 = vrcp.pop %v484
        %v488 = vmul.f32 %v470, %v487
        %v491 = vcombine.low %v486, %v488
        %493 = vst [vmem:[%s218] sm:$0x77] %v491
        %s494 = sand.u32 %s137, 1
        %s495 = scalar_lea.sflag [#allocation3], %s494
        %s496 = sand.u32 %s137, 1
        %s497 = smul.addr %s496, 8
        %s498 = scalar_lea.vmem [#allocation2], %s497
        // Predicated region
        $region41: #{tpu_custom_call.1} parent=39 // pred_check
          %p499 = pneg %p147
        $region42: #{tpu_custom_call.1} parent=39 // pred_check_branch
          %501 = sbr.rel (%p499) target = $region44
        $region43: #{tpu_custom_call.1} parent=39 // pred_region
          %s502 = smul.u32 2, %s19
          %s504 = ssub.s32 128, 128
          %505 = vsyncadd %s495, %s504
          %s506 = smul.addr %s502, 64
          %s507 = scalar_lea.hbm %s5, %s506
          %s509 = sshll.u32 %s498, 4
          %s510 = int_to_ptr.vmem [resolvable:$true] %s509
          %512 = dma.vmem_to_hbm [thread:$0]  %s510, 128, %s507, %s495
        $region44: #{tpu_custom_call.1} parent=39 // pred_fallthru
          _
      $region40: #{tpu_custom_call.1} parent=5 // pred_fallthru
        _
      %p513 = scmp.le.s32.totalorder 2, %s14
      // Predicated region
      $region45: #{tpu_custom_call.1} parent=5 // pred_check
        %p514 = pneg %p513
      $region46: #{tpu_custom_call.1} parent=5 // pred_check_branch
        %516 = sbr.rel (%p514) target = $region48
      $region47: #{tpu_custom_call.1} parent=5 // pred_region
        %s517 = ssub.s32 %s14, 2
        // Predicated region
        $region49: #{tpu_custom_call.1} parent=47 // pred_check
          %p518 = pneg %p153
        $region50: #{tpu_custom_call.1} parent=47 // pred_check_branch
          %520 = sbr.rel (%p518) target = $region52
        $region51: #{tpu_custom_call.1} parent=47 // pred_region
          %s521 = sand.u32 %s138, 1
          %s522 = scalar_lea.sflag [#allocation3], %s521
          %s523 = sand.u32 %s138, 1
          %s524 = smul.addr %s523, 8
          %s525 = scalar_lea.vmem [#allocation2], %s524
          %526 = dma.done %s522, 128
        $region52: #{tpu_custom_call.1} parent=47 // pred_fallthru
          _
      $region48: #{tpu_custom_call.1} parent=5 // pred_fallthru
        _
    $region6: #{tpu_custom_call.1} parent=1 // loop_footer
      %s18 = sadd.s32 1, %s14
    $region7: #{tpu_custom_call.1} parent=1 // loop_footer_branch
      %13 = sbr.rel target = $region3
    $region8: #{tpu_custom_call.1} parent=1 // loop_exit
      _
    %527 = vsyncpa [#allocation3], 1
    %s528 = scalar_lea.sflag [#allocation3], 1
    %529 = vsyncpa %s528, 1

</llo_original>
